<compile_context>
chip_gen: v7x
topology: tpu7x:2x2x1
jax: 0.10.0
libtpu: 0.0.40
codegen_flags: <defaults>
</compile_context>

<pallas_src>
import jax
import jax.numpy as jnp
from jax.experimental import pallas as pl
from jax.experimental.pallas import tpu as pltpu


def _pick_lane_chunk(hw: int) -> int:
    """Largest multiple-of-128 divisor of hw, capped at 2048 lanes.

    Falls back to the full extent when hw is not 128-divisible (still correct;
    just processes the spatial axis in one shot for odd spatial sizes)."""
    if hw % 128 != 0:
        return hw
    best = 128
    c = 256
    while c <= min(hw, 2048):
        if hw % c == 0:
            best = c
        c += 128
    return best


def _se_kernel(x_ref, w1t_ref, b1_ref, w2t_ref, b2_ref, o_ref):
    # x_ref / o_ref: (Bt, C, HW) block; weights/biases are full arrays
    # (weights already transposed in the wrapper).
    Bt, C, HW = x_ref.shape
    chunk = _pick_lane_chunk(HW)
    n_chunks = HW // chunk

    # ---- squeeze: global average pool over spatial dims (chunked over lanes) ----
    acc = jnp.zeros((Bt, C), jnp.float32)
    for ci in range(n_chunks):                       # static slices, short live ranges
        sl = slice(ci * chunk, (ci + 1) * chunk)
        acc = acc + jnp.sum(x_ref[:, :, sl].astype(jnp.float32), axis=-1)
    y = acc * (1.0 / HW)                             # (Bt, C)

    # ---- excitation MLP (weights pre-transposed in the wrapper) ----
    h = jnp.dot(y, w1t_ref[...], preferred_element_type=jnp.float32) + b1_ref[...]
    h = jnp.maximum(h, 0.0)                          # ReLU
    s = jnp.dot(h, w2t_ref[...], preferred_element_type=jnp.float32) + b2_ref[...]
    s = jax.nn.sigmoid(s)                            # (Bt, C)
    s3 = s[:, :, None]                               # broadcast over HW

    # ---- excite: re-read x chunk-by-chunk and store full-width ----
    for ci in range(n_chunks):
        sl = slice(ci * chunk, (ci + 1) * chunk)
        o_ref[:, :, sl] = (x_ref[:, :, sl] * s3).astype(o_ref.dtype)


def _pick_batch_tile(B: int, bytes_per_batch: int,
                     target_bytes: int = 4 * 1024 * 1024) -> int:
    """Largest divisor of B whose x block stays <= target, keeping >=2 grid steps."""
    bt = 1
    for cand in range(B, 0, -1):
        if B % cand != 0:
            continue
        if cand * bytes_per_batch > target_bytes:
            continue
        if B > 1 and (B // cand) < 2:
            continue        # keep both v7x TensorCores busy on the parallel axis
        bt = cand
        break
    return bt


def se_layer(x_nchw, w1, b1, w2, b2):
    """x_nchw: (B, C, H, W); w1: (Cr, C); b1: (Cr,); w2: (C, Cr); b2: (C,)."""
    B, C, H, W = x_nchw.shape
    HW = H * W
    Cr = w1.shape[0]

    x_flat = x_nchw.reshape(B, C, HW)
    # Hoist the weight transposes out of the kernel (done once, not per grid step).
    w1_t = jnp.transpose(w1)          # (C, Cr)
    w2_t = jnp.transpose(w2)          # (Cr, C)
    b1_2d = b1.reshape(1, Cr)
    b2_2d = b2.reshape(1, C)

    itemsize = jnp.dtype(x_flat.dtype).itemsize
    bytes_per_batch = C * HW * itemsize
    Bt = _pick_batch_tile(B, bytes_per_batch)
    grid_b = B // Bt

    # Double-buffered input + output blocks + (small) weights, plus headroom.
    block_bytes = Bt * bytes_per_batch
    weight_bytes = 4 * int(w1_t.size + w2_t.size + b1_2d.size + b2_2d.size)
    needed = 4 * block_bytes + 2 * weight_bytes + (2 << 20)
    vmem_limit = int(min(max(needed, 16 * 1024 * 1024), 48 * 1024 * 1024))

    out_flat = pl.pallas_call(
        _se_kernel,
        out_shape=jax.ShapeDtypeStruct((B, C, HW), x_flat.dtype),
        grid_spec=pltpu.PrefetchScalarGridSpec(
            num_scalar_prefetch=0,
            grid=(grid_b,),
            in_specs=[
                pl.BlockSpec((Bt, C, HW), lambda b: (b, 0, 0)),   # x (Bt batches)
                pl.BlockSpec((C, Cr), lambda b: (0, 0)),          # W1^T (full)
                pl.BlockSpec((1, Cr), lambda b: (0, 0)),          # b1
                pl.BlockSpec((Cr, C), lambda b: (0, 0)),          # W2^T (full)
                pl.BlockSpec((1, C), lambda b: (0, 0)),           # b2
            ],
            out_specs=pl.BlockSpec((Bt, C, HW), lambda b: (b, 0, 0)),
        ),
        compiler_params=pltpu.CompilerParams(
            dimension_semantics=("parallel",),
            vmem_limit_bytes=vmem_limit,
        ),
        # NOTE: input_output_aliases={0: 0} would halve peak HBM footprint in a
        # jitted model (out fully overwrites an x-shaped buffer); left off here
        # because this script calls the kernel eagerly on a still-live x.
    )(x_flat, w1_t, b1_2d, w2_t, b2_2d)

    return out_flat.reshape(B, C, H, W)


def se_layer_ref(x_nchw, w1, b1, w2, b2):
    """Pure-JAX reference mirroring the PyTorch forward."""
    y = jnp.mean(x_nchw, axis=(2, 3))                 # (B, C)
    h = jnp.maximum(y @ w1.T + b1, 0.0)               # (B, Cr)
    s = jax.nn.sigmoid(h @ w2.T + b2)                 # (B, C)
    return x_nchw * s[:, :, None, None]


if __name__ == "__main__":
    # Small shapes consistent with the module: channel divisible by reduction=16.
    B, C, H, W = 2, 32, 16, 16
    reduction = 16
    Cr = C // reduction

    key = jax.random.PRNGKey(0)
    kx, k1, k2, k3, k4 = jax.random.split(key, 5)

    x = jax.random.normal(kx, (B, C, H, W), dtype=jnp.float32)
    # Deterministic synthetic parameters (shapes match nn.Linear weights/biases).
    w1 = jax.random.normal(k1, (Cr, C), dtype=jnp.float32) * 0.1
    b1 = jax.random.normal(k2, (Cr,), dtype=jnp.float32) * 0.1
    w2 = jax.random.normal(k3, (C, Cr), dtype=jnp.float32) * 0.1
    b2 = jax.random.normal(k4, (C,), dtype=jnp.float32) * 0.1

    out = se_layer(x, w1, b1, w2, b2)
    out = jax.block_until_ready(out)

    ref = se_layer_ref(x, w1, b1, w2, b2)
    assert out.shape == (B, C, H, W)
    assert jnp.allclose(out, ref, atol=1e-5, rtol=1e-5), "mismatch vs reference"

    print("KERNEL_OK")
</pallas_src>

<mosaic_0001>
module attributes {stable_mosaic.version = 11 : i64} {
  func.func @_se_kernel(%arg0: i32, %arg1: memref<1x32x256xf32, #tpu.memory_space<vmem>>, %arg2: memref<32x2xf32, #tpu.memory_space<vmem>>, %arg3: memref<1x2xf32, #tpu.memory_space<vmem>>, %arg4: memref<2x32xf32, #tpu.memory_space<vmem>>, %arg5: memref<1x32xf32, #tpu.memory_space<vmem>>, %arg6: memref<1x32x256xf32, #tpu.memory_space<vmem>>) attributes {dimension_semantics = [#tpu.dimension_semantics<parallel>], iteration_bounds = array<i64: 2>, scalar_prefetch = 0 : i64, scratch_operands = 0 : i64, tpu.core_type = #tpu.core_type<tc>, window_params = [{transform_indices = @transform_0, window_bounds = array<i64: 1, 32, 256>}, {pipeline_mode = #tpu.pipeline_mode<synchronous>, transform_indices = @transform_1, window_bounds = array<i64: 32, 2>}, {pipeline_mode = #tpu.pipeline_mode<synchronous>, transform_indices = @transform_2, window_bounds = array<i64: 1, 2>}, {pipeline_mode = #tpu.pipeline_mode<synchronous>, transform_indices = @transform_3, window_bounds = array<i64: 2, 32>}, {pipeline_mode = #tpu.pipeline_mode<synchronous>, transform_indices = @transform_4, window_bounds = array<i64: 1, 32>}, {transform_indices = @transform_5, window_bounds = array<i64: 1, 32, 256>}]} {
    %cst = arith.constant 0.000000e+00 : f32
    %0 = vector.broadcast %cst : f32 to vector<1x32xf32>
    %c0 = arith.constant 0 : index
    %c0_0 = arith.constant 0 : index
    %c0_1 = arith.constant 0 : index
    %1 = vector.load %arg1[%c0, %c0_0, %c0_1] : memref<1x32x256xf32, #tpu.memory_space<vmem>>, vector<1x32x256xf32>
    %cst_2 = arith.constant dense<0.000000e+00> : vector<1x32xf32>
    %2 = vector.multi_reduction <add>, %1, %cst_2 [2] : vector<1x32x256xf32> to vector<1x32xf32>
    %3 = arith.addf %0, %2 : vector<1x32xf32>
    %cst_3 = arith.constant 3.906250e-03 : f32
    %4 = vector.broadcast %cst_3 : f32 to vector<1x32xf32>
    %5 = arith.mulf %3, %4 : vector<1x32xf32>
    %c0_4 = arith.constant 0 : index
    %c0_5 = arith.constant 0 : index
    %6 = vector.load %arg2[%c0_4, %c0_5] : memref<32x2xf32, #tpu.memory_space<vmem>>, vector<32x2xf32>
    %cst_6 = arith.constant dense<0.000000e+00> : vector<1x2xf32>
    %7 = tpu.matmul %5, %6, %cst_6 {dimension_numbers = #tpu.dot_dimension_numbers<[1], [0], [0], [1], [0, 0, 1, 1], [], []>} : vector<1x32xf32>, vector<32x2xf32>, vector<1x2xf32> -> vector<1x2xf32>
    %c0_7 = arith.constant 0 : index
    %c0_8 = arith.constant 0 : index
    %8 = vector.load %arg3[%c0_7, %c0_8] : memref<1x2xf32, #tpu.memory_space<vmem>>, vector<1x2xf32>
    %9 = arith.addf %7, %8 : vector<1x2xf32>
    %cst_9 = arith.constant 0.000000e+00 : f32
    %10 = vector.broadcast %cst_9 : f32 to vector<1x2xf32>
    %11 = arith.maximumf %9, %10 : vector<1x2xf32>
    %c0_10 = arith.constant 0 : index
    %c0_11 = arith.constant 0 : index
    %12 = vector.load %arg4[%c0_10, %c0_11] : memref<2x32xf32, #tpu.memory_space<vmem>>, vector<2x32xf32>
    %cst_12 = arith.constant dense<0.000000e+00> : vector<1x32xf32>
    %13 = tpu.matmul %11, %12, %cst_12 {dimension_numbers = #tpu.dot_dimension_numbers<[1], [0], [0], [1], [0, 0, 1, 1], [], []>} : vector<1x2xf32>, vector<2x32xf32>, vector<1x32xf32> -> vector<1x32xf32>
    %c0_13 = arith.constant 0 : index
    %c0_14 = arith.constant 0 : index
    %14 = vector.load %arg5[%c0_13, %c0_14] : memref<1x32xf32, #tpu.memory_space<vmem>>, vector<1x32xf32>
    %15 = arith.addf %13, %14 : vector<1x32xf32>
    %16 = arith.negf %15 : vector<1x32xf32>
    %17 = math.exp %16 : vector<1x32xf32>
    %cst_15 = arith.constant 1.000000e+00 : f32
    %18 = vector.broadcast %cst_15 : f32 to vector<1x32xf32>
    %19 = arith.addf %18, %17 : vector<1x32xf32>
    %20 = arith.divf %18, %19 : vector<1x32xf32>
    %21 = vector.shape_cast %20 : vector<1x32xf32> to vector<1x32x1xf32>
    %c0_16 = arith.constant 0 : index
    %c0_17 = arith.constant 0 : index
    %c0_18 = arith.constant 0 : index
    %22 = vector.load %arg1[%c0_16, %c0_17, %c0_18] : memref<1x32x256xf32, #tpu.memory_space<vmem>>, vector<1x32x256xf32>
    %23 = vector.broadcast %21 : vector<1x32x1xf32> to vector<1x32x256xf32>
    %24 = arith.mulf %22, %23 : vector<1x32x256xf32>
    %c0_19 = arith.constant 0 : index
    %c0_20 = arith.constant 0 : index
    %c0_21 = arith.constant 0 : index
    %25 = vector.load %arg6[%c0_19, %c0_20, %c0_21] : memref<1x32x256xf32, #tpu.memory_space<vmem>>, vector<1x32x256xf32>
    tpu.vector_store %arg6[%c0_19, %c0_20, %c0_21], %24 {strides = array<i32>} : memref<1x32x256xf32, #tpu.memory_space<vmem>>, vector<1x32x256xf32>,
    return
  }
  func.func @transform_0(%arg0: i32) -> (i32, i32, i32) {
    %c0_i32 = arith.constant 0 : i32
    %c0_i32_0 = arith.constant 0 : i32
    %c0_i32_1 = arith.constant 0 : i32
    return %arg0, %c0_i32, %c0_i32_0 : i32, i32, i32
  }
  func.func @transform_1(%arg0: i32) -> (i32, i32) {
    %c0_i32 = arith.constant 0 : i32
    %c0_i32_0 = arith.constant 0 : i32
    %c0_i32_1 = arith.constant 0 : i32
    return %c0_i32, %c0_i32_0 : i32, i32
  }
  func.func @transform_2(%arg0: i32) -> (i32, i32) {
    %c0_i32 = arith.constant 0 : i32
    %c0_i32_0 = arith.constant 0 : i32
    %c0_i32_1 = arith.constant 0 : i32
    return %c0_i32, %c0_i32_0 : i32, i32
  }
  func.func @transform_3(%arg0: i32) -> (i32, i32) {
    %c0_i32 = arith.constant 0 : i32
    %c0_i32_0 = arith.constant 0 : i32
    %c0_i32_1 = arith.constant 0 : i32
    return %c0_i32, %c0_i32_0 : i32, i32
  }
  func.func @transform_4(%arg0: i32) -> (i32, i32) {
    %c0_i32 = arith.constant 0 : i32
    %c0_i32_0 = arith.constant 0 : i32
    %c0_i32_1 = arith.constant 0 : i32
    return %c0_i32, %c0_i32_0 : i32, i32
  }
  func.func @transform_5(%arg0: i32) -> (i32, i32, i32) {
    %c0_i32 = arith.constant 0 : i32
    %c0_i32_0 = arith.constant 0 : i32
    %c0_i32_1 = arith.constant 0 : i32
    return %arg0, %c0_i32, %c0_i32_0 : i32, i32, i32
  }
}

</mosaic_0001>

<llo_original>
// kernel: tpu_custom_call.1
$region0: #{tpu_custom_call.1}
  #allocation0 [shape = 'u32[]', space=smem, size = 0x4, offset = 0x4, fixed_abs, tag = 'smem constant byte address 0x4 - core index']
  #allocation1 [shape = 'u32[144,128]{1,0:T(1,128)}', space=vmem, size = 0x12000, scoped, tag = 'internal scratch']
  %s0 = inlined_call_operand.hbm [shape: f32[2,32,256], index: 0, kind: input, shape index: {}]
  %s1 = inlined_call_operand.vmem [shape: f32[32,2], index: 1, kind: input, shape index: {}]
  %s2 = inlined_call_operand.vmem [shape: f32[1,2], index: 2, kind: input, shape index: {}]
  %s3 = inlined_call_operand.vmem [shape: f32[2,32], index: 3, kind: input, shape index: {}]
  %s4 = inlined_call_operand.vmem [shape: f32[1,32], index: 4, kind: input, shape index: {}]
  %s5 = inlined_call_operand.hbm [shape: f32[2,32,256], index: 5, kind: output, shape index: {}]
  %s6 = sld [smem:[#allocation0]]
  $region57: #{tpu_custom_call.1} parent=0
    _
  %s8 = ssub.s32 1, %s6
  %s9 = scalar_select 0, %s8, %s6
  $region1: #{tpu_custom_call.1} parent=0
    #allocation2 [shape = 'u8[65536]{0}', space=vmem, size = 0x10000, scoped, tag = 'input window, operand 0']
    #allocation3 [shape = 's32[2]{0}', space=sflag, size = 0x8, scoped, tag = 'scoped memory for tpu_custom_call.1']
    #allocation4 [shape = 's32[2]{0}', space=sflag, size = 0x8, scoped, tag = 'scoped memory for tpu_custom_call.1']
    #allocation5 [shape = 'u8[65536]{0}', space=vmem, size = 0x10000, scoped, tag = 'output window, operand 0']
    %10 = vsyncpa [#allocation3], 0
    %s11 = scalar_lea.sflag [#allocation3], 1
    %12 = vsyncpa %s11, 0
    %13 = vsyncpa [#allocation4], 0
    %s14 = scalar_lea.sflag [#allocation4], 1
    %15 = vsyncpa %s14, 0
    loop: start=0, step=1, limit=4
    $region2: #{tpu_custom_call.1} parent=1 // loop_pre_header
      _
    $region3: #{tpu_custom_call.1} parent=1 // loop_header
      %s17 = sphi 0, %s21
      %p18 = scmp.ge.s32.totalorder %s17, 4
      %s27 = sphi 0, %s29
      %s30 = sphi 0, %s27
      %s31 = sphi 0, %s30
      %s47 = sphi 0, %s31
      %s51 = sphi 0, %s51
      %s53 = sphi 0, %s51
      %s54 = sphi 0, %s53
      %s68 = sphi 0, %s54
      %s72 = sphi 0, %s72
      %s74 = sphi 0, %s72
      %s75 = sphi 0, %s74
      %s89 = sphi 0, %s75
      %s93 = sphi 0, %s93
      %s95 = sphi 0, %s93
      %s96 = sphi 0, %s95
      %s110 = sphi 0, %s96
      %s114 = sphi 0, %s114
      %s116 = sphi 0, %s114
      %s117 = sphi 0, %s116
      %s131 = sphi 0, %s117
      %s137 = sphi 0, %s139
      %s140 = sphi 0, %s137
      %s141 = sphi 0, %s140
      %s157 = sphi 0, %s141
    $region4: #{tpu_custom_call.1} parent=1 // loop_header_branch
      %20 = sbr.rel (%p18) target = $region8
    $region5: #{tpu_custom_call.1} parent=1 // loop_body
      %s22 = ssub.s32 %s17, 1
      %s23 = ssub.s32 %s17, 2
      %s24 = sadd.s32 %s17, 1
      %s25 = ssub.s32 %s17, %s24
      %p26 = scmp.eq.s32.totalorder %s25, 0
      %s28 = sadd.s32 %s27, 1
      %s29 = scalar_select %p26, %s27, %s28
      %p32 = pneg %p26
      %p33 = scmp.eq.s32.totalorder %s17, 1
      %p34 = por %p32, %p33
      %p35 = scmp.ne.s32.totalorder %s27, %s30
      %p36 = scmp.eq.s32.totalorder %s17, 0
      %p37 = por %p35, %p36
      %p38 = scmp.ne.s32.totalorder %s27, %s30
      %p39 = scmp.eq.s32.totalorder %s22, 1
      %p40 = por %p38, %p39
      %p41 = scmp.ne.s32.totalorder %s30, %s31
      %p42 = scmp.eq.s32.totalorder %s22, 0
      %p43 = por %p41, %p42
      %p44 = scmp.ne.s32.totalorder %s30, %s31
      %p45 = scmp.eq.s32.totalorder %s23, 1
      %p46 = por %p44, %p45
      %p48 = scmp.ne.s32.totalorder %s31, %s47
      %p49 = scmp.eq.s32.totalorder %s23, 0
      %p50 = por %p48, %p49
      %s52 = sadd.s32 %s51, 1
      %p55 = scmp.eq.s32.totalorder %s17, 1
      %p56 = scmp.ne.s32.totalorder %s51, %s53
      %p57 = scmp.eq.s32.totalorder %s17, 0
      %p58 = por %p56, %p57
      %p59 = scmp.ne.s32.totalorder %s51, %s53
      %p60 = scmp.eq.s32.totalorder %s22, 1
      %p61 = por %p59, %p60
      %p62 = scmp.ne.s32.totalorder %s53, %s54
      %p63 = scmp.eq.s32.totalorder %s22, 0
      %p64 = por %p62, %p63
      %p65 = scmp.ne.s32.totalorder %s53, %s54
      %p66 = scmp.eq.s32.totalorder %s23, 1
      %p67 = por %p65, %p66
      %p69 = scmp.ne.s32.totalorder %s54, %s68
      %p70 = scmp.eq.s32.totalorder %s23, 0
      %p71 = por %p69, %p70
      %s73 = sadd.s32 %s72, 1
      %p76 = scmp.eq.s32.totalorder %s17, 1
      %p77 = scmp.ne.s32.totalorder %s72, %s74
      %p78 = scmp.eq.s32.totalorder %s17, 0
      %p79 = por %p77, %p78
      %p80 = scmp.ne.s32.totalorder %s72, %s74
      %p81 = scmp.eq.s32.totalorder %s22, 1
      %p82 = por %p80, %p81
      %p83 = scmp.ne.s32.totalorder %s74, %s75
      %p84 = scmp.eq.s32.totalorder %s22, 0
      %p85 = por %p83, %p84
      %p86 = scmp.ne.s32.totalorder %s74, %s75
      %p87 = scmp.eq.s32.totalorder %s23, 1
      %p88 = por %p86, %p87
      %p90 = scmp.ne.s32.totalorder %s75, %s89
      %p91 = scmp.eq.s32.totalorder %s23, 0
      %p92 = por %p90, %p91
      %s94 = sadd.s32 %s93, 1
      %p97 = scmp.eq.s32.totalorder %s17, 1
      %p98 = scmp.ne.s32.totalorder %s93, %s95
      %p99 = scmp.eq.s32.totalorder %s17, 0
      %p100 = por %p98, %p99
      %p101 = scmp.ne.s32.totalorder %s93, %s95
      %p102 = scmp.eq.s32.totalorder %s22, 1
      %p103 = por %p101, %p102
      %p104 = scmp.ne.s32.totalorder %s95, %s96
      %p105 = scmp.eq.s32.totalorder %s22, 0
      %p106 = por %p104, %p105
      %p107 = scmp.ne.s32.totalorder %s95, %s96
      %p108 = scmp.eq.s32.totalorder %s23, 1
      %p109 = por %p107, %p108
      %p111 = scmp.ne.s32.totalorder %s96, %s110
      %p112 = scmp.eq.s32.totalorder %s23, 0
      %p113 = por %p111, %p112
      %s115 = sadd.s32 %s114, 1
      %p118 = scmp.eq.s32.totalorder %s17, 1
      %p119 = scmp.ne.s32.totalorder %s114, %s116
      %p120 = scmp.eq.s32.totalorder %s17, 0
      %p121 = por %p119, %p120
      %p122 = scmp.ne.s32.totalorder %s114, %s116
      %p123 = scmp.eq.s32.totalorder %s22, 1
      %p124 = por %p122, %p123
      %p125 = scmp.ne.s32.totalorder %s116, %s117
      %p126 = scmp.eq.s32.totalorder %s22, 0
      %p127 = por %p125, %p126
      %p128 = scmp.ne.s32.totalorder %s116, %s117
      %p129 = scmp.eq.s32.totalorder %s23, 1
      %p130 = por %p128, %p129
      %p132 = scmp.ne.s32.totalorder %s117, %s131
      %p133 = scmp.eq.s32.totalorder %s23, 0
      %p134 = por %p132, %p133
      %s135 = ssub.s32 %s17, %s24
      %p136 = scmp.eq.s32.totalorder %s135, 0
      %s138 = sadd.s32 %s137, 1
      %s139 = scalar_select %p136, %s137, %s138
      %p142 = pneg %p136
      %p143 = scmp.eq.s32.totalorder %s17, 1
      %p144 = por %p142, %p143
      %p145 = scmp.ne.s32.totalorder %s137, %s140
      %p146 = scmp.eq.s32.totalorder %s17, 0
      %p147 = por %p145, %p146
      %p148 = scmp.ne.s32.totalorder %s137, %s140
      %p149 = scmp.eq.s32.totalorder %s22, 1
      %p150 = por %p148, %p149
      %p151 = scmp.ne.s32.totalorder %s140, %s141
      %p152 = scmp.eq.s32.totalorder %s22, 0
      %p153 = por %p151, %p152
      %p154 = scmp.ne.s32.totalorder %s140, %s141
      %p155 = scmp.eq.s32.totalorder %s23, 1
      %p156 = por %p154, %p155
      %p158 = scmp.ne.s32.totalorder %s141, %s157
      %p159 = scmp.eq.s32.totalorder %s23, 0
      %p160 = por %p158, %p159
      %p161 = scmp.le.s32.totalorder 1, %s17
      %p162 = scmp.lt.s32.totalorder %s17, 3
      %p163 = pnand %p161, %p162
      %p164 = pneg %p163
      // Predicated region
      $region9: #{tpu_custom_call.1} parent=5 // pred_check
        _
      $region10: #{tpu_custom_call.1} parent=5 // pred_check_branch
        %166 = sbr.rel (%p163) target = $region12
      $region11: #{tpu_custom_call.1} parent=5 // pred_region
        %s167 = ssub.s32 %s17, 1
        // Predicated region
        $region13: #{tpu_custom_call.1} parent=11 // pred_check
          %p168 = pneg %p64
        $region14: #{tpu_custom_call.1} parent=11 // pred_check_branch
          %170 = sbr.rel (%p168) target = $region16
        $region15: #{tpu_custom_call.1} parent=11 // pred_region
          _
        $region16: #{tpu_custom_call.1} parent=11 // pred_fallthru
          _
        // Predicated region
        $region17: #{tpu_custom_call.1} parent=11 // pred_check
          %p171 = pneg %p85
        $region18: #{tpu_custom_call.1} parent=11 // pred_check_branch
          %173 = sbr.rel (%p171) target = $region20
        $region19: #{tpu_custom_call.1} parent=11 // pred_region
          _
        $region20: #{tpu_custom_call.1} parent=11 // pred_fallthru
          _
        // Predicated region
        $region21: #{tpu_custom_call.1} parent=11 // pred_check
          %p174 = pneg %p106
        $region22: #{tpu_custom_call.1} parent=11 // pred_check_branch
          %176 = sbr.rel (%p174) target = $region24
        $region23: #{tpu_custom_call.1} parent=11 // pred_region
          _
        $region24: #{tpu_custom_call.1} parent=11 // pred_fallthru
          _
        // Predicated region
        $region25: #{tpu_custom_call.1} parent=11 // pred_check
          %p177 = pneg %p127
        $region26: #{tpu_custom_call.1} parent=11 // pred_check_branch
          %179 = sbr.rel (%p177) target = $region28
        $region27: #{tpu_custom_call.1} parent=11 // pred_region
          _
        $region28: #{tpu_custom_call.1} parent=11 // pred_fallthru
          _
      $region12: #{tpu_custom_call.1} parent=5 // pred_fallthru
        _
      %p180 = scmp.lt.s32.totalorder %s17, 2
      // Predicated region
      $region29: #{tpu_custom_call.1} parent=5 // pred_check
        %p181 = pneg %p180
      $region30: #{tpu_custom_call.1} parent=5 // pred_check_branch
        %183 = sbr.rel (%p181) target = $region32
      $region31: #{tpu_custom_call.1} parent=5 // pred_region
        // Predicated region
        $region33: #{tpu_custom_call.1} parent=31 // pred_check
          %p184 = pneg %p37
        $region34: #{tpu_custom_call.1} parent=31 // pred_check_branch
          %186 = sbr.rel (%p184) target = $region36
        $region35: #{tpu_custom_call.1} parent=31 // pred_region
          %s187 = sand.u32 %s27, 1
          %s188 = scalar_lea.sflag [#allocation3], %s187
          %s189 = sand.u32 %s27, 1
          %s190 = smul.addr %s189, 64
          %s191 = scalar_lea.vmem [#allocation2], %s190
          %s193 = ssub.s32 1024, 1024
          %194 = vsyncadd %s188, %s193
          %s195 = smul.addr %s17, 8
          %s196 = smul.addr %s195, 128
          %s197 = scalar_lea.hbm %s0, %s196
          %s198 = sshll.u32 %s191, 4
          %s199 = int_to_ptr.vmem [resolvable:$true] %s198
          %204 = dma.hbm_to_vmem [thread:$0]  %s197, 1024, %s199, %s188, 256, 256, 16
        $region36: #{tpu_custom_call.1} parent=31 // pred_fallthru
          _
      $region32: #{tpu_custom_call.1} parent=5 // pred_fallthru
        _
      %p205 = scmp.le.s32.totalorder 1, %s17
      %p206 = scmp.lt.s32.totalorder %s17, 3
      %p207 = pnand %p205, %p206
      %p208 = pneg %p207
      // Predicated region
      $region37: #{tpu_custom_call.1} parent=5 // pred_check
        _
      $region38: #{tpu_custom_call.1} parent=5 // pred_check_branch
        %210 = sbr.rel (%p207) target = $region40
      $region39: #{tpu_custom_call.1} parent=5 // pred_region
        %s211 = ssub.s32 %s17, 1
        %s212 = sand.u32 %s30, 1
        %s213 = scalar_lea.sflag [#allocation3], %s212
        %s214 = sand.u32 %s30, 1
        %s215 = smul.addr %s214, 64
        %s216 = scalar_lea.vmem [#allocation2], %s215
        // Predicated region
        $region41: #{tpu_custom_call.1} parent=39 // pred_check
          %p217 = pneg %p43
        $region42: #{tpu_custom_call.1} parent=39 // pred_check_branch
          %219 = sbr.rel (%p217) target = $region44
        $region43: #{tpu_custom_call.1} parent=39 // pred_region
          %220 = dma.done %s213, 1024
        $region44: #{tpu_custom_call.1} parent=39 // pred_fallthru
          _
        %s221 = sand.u32 %s30, 1
        %s222 = scalar_lea.sflag [#allocation3], %s221
        %s223 = sand.u32 %s30, 1
        %s224 = smul.addr %s223, 64
        %s225 = scalar_lea.vmem [#allocation2], %s224
        %p226 = pneg %p43
        %p227 = pneg %p40
        %p228 = pneg %p64
        %p229 = pneg %p61
        %p230 = pneg %p85
        %p231 = pneg %p82
        %p232 = pneg %p106
        %p233 = pneg %p103
        %p234 = pneg %p127
        %p235 = pneg %p124
        %p236 = pneg %p153
        %p237 = pneg %p150
        %s238 = sand.u32 %s140, 1
        %s239 = scalar_lea.sflag [#allocation4], %s238
        %s240 = sand.u32 %s140, 1
        %s241 = smul.addr %s240, 64
        %s242 = scalar_lea.vmem [#allocation5], %s241
        %v243 = vld [vmem:[%s216] sm:$0xff]
        %v244 = vld [vmem:[%s216 + $0x8] sm:$0xff]
        %v245 = vld [vmem:[%s216 + $0x10] sm:$0xff]
        %v246 = vld [vmem:[%s216 + $0x18] sm:$0xff]
        %v247 = vld [vmem:[%s216 + $0x20] sm:$0xff]
        %v248 = vld [vmem:[%s216 + $0x28] sm:$0xff]
        %v249 = vld [vmem:[%s216 + $0x30] sm:$0xff]
        %v250 = vld [vmem:[%s216 + $0x38] sm:$0xff]
        %v251 = vadd.f32 %v243, %v244
        %252 = vadd.xlane.f32.xlu0 %v251
        %v253 = vpop.xlane.xlu0 %252
        %v254 = vadd.f32 %v245, %v246
        %255 = vadd.xlane.f32.xlu0 %v254
        %v256 = vpop.xlane.xlu0 %255
        %v257 = vadd.f32 %v247, %v248
        %258 = vadd.xlane.f32.xlu0 %v257
        %v259 = vpop.xlane.xlu0 %258
        %v260 = vadd.f32 %v249, %v250
        %261 = vadd.xlane.f32.xlu0 %v260
        %v262 = vpop.xlane.xlu0 %261
        %v263 = vadd.f32 %v253, 0.0
        %v264 = vadd.f32 %v256, 0.0
        %v265 = vadd.f32 %v259, 0.0
        %v266 = vadd.f32 %v262, 0.0
        %v267 = vmul.f32 %v263, 0.00390625
        %v268 = vmul.f32 %v264, 0.00390625
        %v269 = vmul.f32 %v265, 0.00390625
        %v270 = vmul.f32 %v266, 0.00390625
        %v271 = vld [vmem:[%s1] sm:$0xff]
        %v272 = vld [vmem:[%s1 + $0x8] sm:$0xff]
        %v273 = vld [vmem:[%s1 + $0x10] sm:$0xff]
        %v274 = vld [vmem:[%s1 + $0x18] sm:$0xff]
        %v275 = vld [vmem:[%s2] sm:$0x1]
        %v280 = vlaneseq
        %v281 = vand.u32 %v280, 127
        %v282 = vlaneseq
        %v283 = vshrl.u32 %v282, 7
        %v284 = vsub.s32 %v281, %v283
        %v285 = vrot.slane %v267, %v284
        %v286 = vadd.s32 %v281, 4294967288
        %v287 = vlaneseq
        %v288 = vshrl.u32 %v287, 7
        %v289 = vsub.s32 %v286, %v288
        %v290 = vrot.slane %v268, %v289
        %vm291 = vcmask 130112
        %v292 = vsel %vm291, %v290, %v285
        %v293 = vadd.s32 %v281, 4294967280
        %v294 = vlaneseq
        %v295 = vshrl.u32 %v294, 7
        %v296 = vsub.s32 %v293, %v295
        %v297 = vrot.slane %v269, %v296
        %vm298 = vcmask 195712
        %v299 = vsel %vm298, %v297, %v292
        %v300 = vadd.s32 %v281, 4294967272
        %v301 = vlaneseq
        %v302 = vshrl.u32 %v301, 7
        %v303 = vsub.s32 %v300, %v302
        %v304 = vrot.slane %v270, %v303
        %vm305 = vcmask 261312
        %v306 = vsel %vm305, %v304, %v299
        %vm307 = vcmask 261120
        %v308 = vsel %vm307, %v306, 0
        %310 = vmatprep.subr.mxu0 0.0
        %311 = vmatpush1.msra.mxu0 %v271
        %312 = vmatprep.subr.mxu0 0.0
        %313 = vmatpush1.msra.mxu0 %v272
        %314 = vmatprep.subr.mxu0 0.0
        %315 = vmatpush1.msra.mxu0 %v273
        %316 = vmatprep.subr.mxu0 0.0
        %317 = vmatpush1.msra.mxu0 %v274
        %318 = vmatprep.subr.mxu0 0.0
        %319 = vmatpush1.msra.mxu0 0.0
        %320 = vmatprep.subr.mxu0 0.0
        %321 = vmatpush1.msra.mxu0 0.0
        %322 = vmatprep.subr.mxu0 0.0
        %323 = vmatpush1.msra.mxu0 0.0
        %324 = vmatprep.subr.mxu0 0.0
        %325 = vmatpush1.msra.mxu0 0.0
        %326 = vmatprep.subr.mxu0 0.0
        %327 = vmatpush1.msra.mxu0 0.0
        %328 = vmatprep.subr.mxu0 0.0
        %329 = vmatpush1.msra.mxu0 0.0
        %330 = vmatprep.subr.mxu0 0.0
        %331 = vmatpush1.msra.mxu0 0.0
        %332 = vmatprep.subr.mxu0 0.0
        %333 = vmatpush1.msra.mxu0 0.0
        %334 = vmatprep.subr.mxu0 0.0
        %335 = vmatpush1.msra.mxu0 0.0
        %336 = vmatprep.subr.mxu0 0.0
        %337 = vmatpush1.msra.mxu0 0.0
        %338 = vmatprep.subr.mxu0 0.0
        %339 = vmatpush1.msra.mxu0 0.0
        %340 = vmatprep.subr.mxu0 0.0
        %341 = vmatpush1.msra.mxu0 0.0
        %342 = vmatprep.subr.mxu0 0.0
        %343 = vmatpush1.msra.mxu0 0.0
        %344 = vmatprep.subr.mxu0 0.0
        %345 = vmatpush1.msra.mxu0 0.0
        %346 = vmatprep.subr.mxu0 0.0
        %347 = vmatpush1.msra.mxu0 0.0
        %348 = vmatprep.subr.mxu0 0.0
        %349 = vmatpush1.msra.mxu0 0.0
        %350 = vmatprep.subr.mxu0 0.0
        %351 = vmatpush1.msra.mxu0 0.0
        %352 = vmatprep.subr.mxu0 0.0
        %353 = vmatpush1.msra.mxu0 0.0
        %354 = vmatprep.subr.mxu0 0.0
        %355 = vmatpush1.msra.mxu0 0.0
        %356 = vmatprep.subr.mxu0 0.0
        %357 = vmatpush1.msra.mxu0 0.0
        %358 = vmatprep.subr.mxu0 0.0
        %359 = vmatpush1.msra.mxu0 0.0
        %360 = vmatprep.subr.mxu0 0.0
        %361 = vmatpush1.msra.mxu0 0.0
        %362 = vmatprep.subr.mxu0 0.0
        %363 = vmatpush1.msra.mxu0 0.0
        %364 = vmatprep.subr.mxu0 0.0
        %365 = vmatpush1.msra.mxu0 0.0
        %366 = vmatprep.subr.mxu0 0.0
        %367 = vmatpush1.msra.mxu0 0.0
        %368 = vmatprep.subr.mxu0 0.0
        %369 = vmatpush1.msra.mxu0 0.0
        %370 = vmatprep.subr.mxu0 0.0
        %371 = vmatpush1.msra.mxu0 0.0
        %372 = vmatprep.subr.mxu0 0.0
        %373 = vmatpush1.msra.mxu0 0.0
        %374 = vmatprep.mubr.f32.mxu0 0.0
        %375 = vmatmul.mubr.f32.gmra.mrb[0].mxu0 %v308
        %v376 = vpop.f32.mrb[0].mxu0
        %v377 = vadd.f32 %v275, %v376
        %v378 = vpop.f32.mrb[0].mxu0
        %379 = vdwg.mxu0
        %v380 = vmax.f32 %v377, 0.0
        %v381 = vld [vmem:[%s3] sm:$0x3]
        %v382 = vld [vmem:[%s4] sm:$0x1]
        %vm383 = vcmask 15360
        %v385 = vsel %vm383, %v380, 0
        %vm387 = vcmask 1041408
        %v389 = vsel %vm387, %v381, 0
        %391 = vmatprep.subr.mxu0 0.0
        %392 = vmatpush1.msra.mxu0 %v389
        %393 = vmatprep.subr.mxu0 0.0
        %394 = vmatpush1.msra.mxu0 0.0
        %395 = vmatprep.subr.mxu0 0.0
        %396 = vmatpush1.msra.mxu0 0.0
        %397 = vmatprep.subr.mxu0 0.0
        %398 = vmatpush1.msra.mxu0 0.0
        %399 = vmatprep.subr.mxu0 0.0
        %400 = vmatpush1.msra.mxu0 0.0
        %401 = vmatprep.subr.mxu0 0.0
        %402 = vmatpush1.msra.mxu0 0.0
        %403 = vmatprep.subr.mxu0 0.0
        %404 = vmatpush1.msra.mxu0 0.0
        %405 = vmatprep.subr.mxu0 0.0
        %406 = vmatpush1.msra.mxu0 0.0
        %407 = vmatprep.subr.mxu0 0.0
        %408 = vmatpush1.msra.mxu0 0.0
        %409 = vmatprep.subr.mxu0 0.0
        %410 = vmatpush1.msra.mxu0 0.0
        %411 = vmatprep.subr.mxu0 0.0
        %412 = vmatpush1.msra.mxu0 0.0
        %413 = vmatprep.subr.mxu0 0.0
        %414 = vmatpush1.msra.mxu0 0.0
        %415 = vmatprep.subr.mxu0 0.0
        %416 = vmatpush1.msra.mxu0 0.0
        %417 = vmatprep.subr.mxu0 0.0
        %418 = vmatpush1.msra.mxu0 0.0
        %419 = vmatprep.subr.mxu0 0.0
        %420 = vmatpush1.msra.mxu0 0.0
        %421 = vmatprep.subr.mxu0 0.0
        %422 = vmatpush1.msra.mxu0 0.0
        %423 = vmatprep.subr.mxu0 0.0
        %424 = vmatpush1.msra.mxu0 0.0
        %425 = vmatprep.subr.mxu0 0.0
        %426 = vmatpush1.msra.mxu0 0.0
        %427 = vmatprep.subr.mxu0 0.0
        %428 = vmatpush1.msra.mxu0 0.0
        %429 = vmatprep.subr.mxu0 0.0
        %430 = vmatpush1.msra.mxu0 0.0
        %431 = vmatprep.subr.mxu0 0.0
        %432 = vmatpush1.msra.mxu0 0.0
        %433 = vmatprep.subr.mxu0 0.0
        %434 = vmatpush1.msra.mxu0 0.0
        %435 = vmatprep.subr.mxu0 0.0
        %436 = vmatpush1.msra.mxu0 0.0
        %437 = vmatprep.subr.mxu0 0.0
        %438 = vmatpush1.msra.mxu0 0.0
        %439 = vmatprep.subr.mxu0 0.0
        %440 = vmatpush1.msra.mxu0 0.0
        %441 = vmatprep.subr.mxu0 0.0
        %442 = vmatpush1.msra.mxu0 0.0
        %443 = vmatprep.subr.mxu0 0.0
        %444 = vmatpush1.msra.mxu0 0.0
        %445 = vmatprep.subr.mxu0 0.0
        %446 = vmatpush1.msra.mxu0 0.0
        %447 = vmatprep.subr.mxu0 0.0
        %448 = vmatpush1.msra.mxu0 0.0
        %449 = vmatprep.subr.mxu0 0.0
        %450 = vmatpush1.msra.mxu0 0.0
        %451 = vmatprep.subr.mxu0 0.0
        %452 = vmatpush1.msra.mxu0 0.0
        %453 = vmatprep.subr.mxu0 0.0
        %454 = vmatpush1.msra.mxu0 0.0
        %455 = vmatprep.mubr.f32.mxu0 0.0
        %456 = vmatmul.mubr.f32.gmra.mrb[0].mxu0 %v385
        %v457 = vpop.f32.mrb[0].mxu0
        %v458 = vadd.f32 %v382, %v457
        %v459 = vpop.f32.mrb[0].mxu0
        %460 = vdwg.mxu0
        %v461 = vxor.u32 %v458, 2147483648
        %v462 = vmul.f32 %v461, 1.442695
        %v463 = vpow.pop %v462
        %v464 = vadd.f32 %v463, 1.0
        %v465 = vrcp.pop %v464
        %v466 = vmul.f32 1.0, %v465
        %v467 = vlaneseq
        %v468 = vshrl.u32 %v467, 7
        %v469 = vsub.s32 0, %v468
        %v470 = vrot.slane %v466, %v469
        %472 = vbcast.lane.b32.xlu0 %v470, 256
        %v473 = vpop.permute.xlu0 %472
        %s475 = sor.u32 256, 8
        %476 = vbcast.lane.b32.xlu0 %v470, %s475
        %v477 = vpop.permute.xlu0 %476
        %s479 = sor.u32 256, 16
        %480 = vbcast.lane.b32.xlu0 %v470, %s479
        %v481 = vpop.permute.xlu0 %480
        %s483 = sor.u32 256, 24
        %484 = vbcast.lane.b32.xlu0 %v470, %s483
        %v485 = vpop.permute.xlu0 %484
        %v486 = vmul.f32 %v243, %v473
        %v487 = vmul.f32 %v244, %v473
        %v488 = vmul.f32 %v245, %v477
        %v489 = vmul.f32 %v246, %v477
        %v490 = vmul.f32 %v247, %v481
        %v491 = vmul.f32 %v248, %v481
        %v492 = vmul.f32 %v249, %v485
        %v493 = vmul.f32 %v250, %v485
        %494 = vst [vmem:[%s242] sm:$0xff] %v486
        %495 = vst [vmem:[%s242 + $0x8] sm:$0xff] %v487
        %496 = vst [vmem:[%s242 + $0x10] sm:$0xff] %v488
        %497 = vst [vmem:[%s242 + $0x18] sm:$0xff] %v489
        %498 = vst [vmem:[%s242 + $0x20] sm:$0xff] %v490
        %499 = vst [vmem:[%s242 + $0x28] sm:$0xff] %v491
        %500 = vst [vmem:[%s242 + $0x30] sm:$0xff] %v492
        %501 = vst [vmem:[%s242 + $0x38] sm:$0xff] %v493
        %s502 = sand.u32 %s140, 1
        %s503 = scalar_lea.sflag [#allocation4], %s502
        %s504 = sand.u32 %s140, 1
        %s505 = smul.addr %s504, 64
        %s506 = scalar_lea.vmem [#allocation5], %s505
        // Predicated region
        $region45: #{tpu_custom_call.1} parent=39 // pred_check
          %p507 = pneg %p150
        $region46: #{tpu_custom_call.1} parent=39 // pred_check_branch
          %509 = sbr.rel (%p507) target = $region48
        $region47: #{tpu_custom_call.1} parent=39 // pred_region
          %s511 = ssub.s32 1024, 1024
          %512 = vsyncadd %s503, %s511
          %s513 = smul.addr %s22, 8
          %s514 = smul.addr %s513, 128
          %s515 = scalar_lea.hbm %s5, %s514
          %s516 = sshll.u32 %s506, 4
          %s517 = int_to_ptr.vmem [resolvable:$true] %s516
          %522 = dma.vmem_to_hbm [thread:$0]  %s517, 1024, %s515, %s503, 256, 256, 16
        $region48: #{tpu_custom_call.1} parent=39 // pred_fallthru
          _
      $region40: #{tpu_custom_call.1} parent=5 // pred_fallthru
        _
      %p523 = scmp.le.s32.totalorder 2, %s17
      // Predicated region
      $region49: #{tpu_custom_call.1} parent=5 // pred_check
        %p524 = pneg %p523
      $region50: #{tpu_custom_call.1} parent=5 // pred_check_branch
        %526 = sbr.rel (%p524) target = $region52
      $region51: #{tpu_custom_call.1} parent=5 // pred_region
        %s527 = ssub.s32 %s17, 2
        // Predicated region
        $region53: #{tpu_custom_call.1} parent=51 // pred_check
          %p528 = pneg %p156
        $region54: #{tpu_custom_call.1} parent=51 // pred_check_branch
          %530 = sbr.rel (%p528) target = $region56
        $region55: #{tpu_custom_call.1} parent=51 // pred_region
          %s531 = sand.u32 %s141, 1
          %s532 = scalar_lea.sflag [#allocation4], %s531
          %s533 = sand.u32 %s141, 1
          %s534 = smul.addr %s533, 64
          %s535 = scalar_lea.vmem [#allocation5], %s534
          %536 = dma.done %s532, 1024
        $region56: #{tpu_custom_call.1} parent=51 // pred_fallthru
          _
      $region52: #{tpu_custom_call.1} parent=5 // pred_fallthru
        _
    $region6: #{tpu_custom_call.1} parent=1 // loop_footer
      %s21 = sadd.s32 1, %s17
    $region7: #{tpu_custom_call.1} parent=1 // loop_footer_branch
      %16 = sbr.rel target = $region3
    $region8: #{tpu_custom_call.1} parent=1 // loop_exit
      _
    %537 = vsyncpa [#allocation3], 1
    %s538 = scalar_lea.sflag [#allocation3], 1
    %539 = vsyncpa %s538, 1
    %540 = vsyncpa [#allocation4], 1
    %s541 = scalar_lea.sflag [#allocation4], 1
    %542 = vsyncpa %s541, 1

</llo_original>
